<compile_context>
chip_gen: v7x
topology: tpu7x:2x2x1
jax: 0.10.0
libtpu: 0.0.40
codegen_flags: <defaults>
</compile_context>

<pallas_src>
import functools

import jax
import jax.numpy as jnp
from jax import lax
from jax.experimental import pallas as pl
from jax.experimental.pallas import tpu as pltpu


def _round_up(x, m):
    return ((x + m - 1) // m) * m


def _cos_distill_kernel(x_ref, y_ref, o_ref, dot_acc, xx_acc, yy_acc, *,
                        eps, d_total, d_tile, mask_d_tail):
    """One (TB, TD, TK) block of both inputs; accumulate per-class cosine stats.

    Grid = (batch_tiles, class_tiles, d_tiles).  The d axis (last, "arbitrary")
    is the cosine-reduction axis; partials live in VMEM scratch and are
    finalized into the (TB, 1, TK) output block on the last d step.
    """
    d = pl.program_id(2)
    nd = pl.num_programs(2)

    @pl.when(d == 0)
    def _():
        dot_acc[...] = jnp.zeros_like(dot_acc)
        xx_acc[...] = jnp.zeros_like(xx_acc)
        yy_acc[...] = jnp.zeros_like(yy_acc)

    # Blocks arrive in the input's native dtype (bf16 halves HBM traffic);
    # cast to f32 in VMEM for the products / reductions.
    x = x_ref[...].astype(jnp.float32)          # (TB, TD, TK)
    y = y_ref[...].astype(jnp.float32)

    if mask_d_tail:
        # Last D tile may reach past D: zero the padded sublanes so they do
        # not contaminate the reduction (lane/batch padding is discarded by
        # the output bounds, but D padding would corrupt real lanes).
        rem = d_total - d * d_tile
        rows = lax.broadcasted_iota(jnp.int32, (d_tile, x.shape[-1]), 0)
        valid = (rows < rem)[None]              # (1, TD, TK)
        x = jnp.where(valid, x, 0.0)
        y = jnp.where(valid, y, 0.0)

    dot_acc[...] += jnp.sum(x * y, axis=1, keepdims=True)   # (TB, 1, TK)
    xx_acc[...] += jnp.sum(x * x, axis=1, keepdims=True)
    yy_acc[...] += jnp.sum(y * y, axis=1, keepdims=True)

    @pl.when(d == nd - 1)
    def _():
        # torch.cosine_similarity clamps each norm to eps separately.
        nx = jnp.maximum(jnp.sqrt(xx_acc[...]), eps)
        ny = jnp.maximum(jnp.sqrt(yy_acc[...]), eps)
        o_ref[...] = (1.0 - dot_acc[...] / (nx * ny)).astype(o_ref.dtype)


def _choose_tiles(B, D, K, bpe, block_bytes):
    """Pick (TB, TD, TK) so one input block is <= ~block_bytes (native dtype)."""
    # Lane tile: multiple of 128 covering K, leaving room for >= 8 sublanes.
    tk = _round_up(K, 128)
    max_tk = max(128, ((block_bytes // (8 * bpe)) // 128) * 128)
    tk = max(128, min(tk, max_tk))
    # Reduction (sublane) tile: full D if it fits, otherwise a multiple of 8.
    if D * tk * bpe <= block_bytes:
        td = D
    else:
        td = max(8, ((block_bytes // (tk * bpe)) // 8) * 8)
    # Batch rows per block: amortize per-grid-step overhead for small D*K.
    blk = td * tk * bpe
    tb_target = max(1, block_bytes // blk) if td == D else 1
    if tb_target >= B:
        tb = B                       # full extent -> always a legal block dim
    elif tb_target >= 8:
        tb = (tb_target // 8) * 8    # sublane-friendly multiple of 8
    else:
        tb = 1
    return tb, td, tk


def cls_fo_distill(output, output_old, beta, old_classes, *,
                   eps=1e-8, block_bytes=None, vmem_limit_bytes=None):
    """Pallas TPU implementation of clsFODistill.forward.

    output:     (B, D, C_new)  any float dtype (read as-is, no pre-copy)
    output_old: (B, D, C_old)
    beta:       scalar (or broadcastable against the (B, old_classes) loss map)
    """
    B, D, _ = output.shape
    K = int(old_classes)

    bpe = max(jnp.dtype(output.dtype).itemsize,
              jnp.dtype(output_old.dtype).itemsize)

    try:
        vmem_cap = int(pltpu.get_tpu_info().vmem_capacity_bytes)
    except Exception:
        vmem_cap = 64 << 20          # conservative fallback (v7x per-TC VMEM)

    if block_bytes is None:
        # ~VMEM/16 per input block: 2 inputs x 2 pipeline buffers plus the
        # in-kernel f32 casts/products stay well inside the scoped limit.
        block_bytes = min(max(vmem_cap // 16, 1 << 20), 8 << 20)
    if vmem_limit_bytes is None:
        vmem_limit_bytes = max(32 << 20, min((vmem_cap * 3) // 4, 96 << 20))

    TB, TD, TK = _choose_tiles(B, D, K, bpe, int(block_bytes))
    nbt = pl.cdiv(B, TB)
    nkt = pl.cdiv(K, TK)
    ndt = pl.cdiv(D, TD)
    # NOTE: for realistic shapes nbt*nkt >= 2, so v7x megacore gets both TCs
    # working on the "parallel" axes; tiny problems collapse to a single step.

    kernel = functools.partial(
        _cos_distill_kernel, eps=float(eps), d_total=D, d_tile=TD,
        mask_d_tail=(D % TD != 0))

    # Inputs go in un-sliced / un-padded / native dtype.  Class lanes >= K in
    # the last class tile (and padded batch-edge rows) produce garbage that
    # never reaches HBM: the output shape is exactly (B, 1, K), so the edge
    # writes are masked.
    loss3 = pl.pallas_call(
        kernel,
        out_shape=jax.ShapeDtypeStruct((B, 1, K), jnp.float32),
        grid_spec=pltpu.PrefetchScalarGridSpec(
            num_scalar_prefetch=0,
            grid=(nbt, nkt, ndt),
            in_specs=[
                pl.BlockSpec((TB, TD, TK), lambda b, k, d: (b, d, k)),
                pl.BlockSpec((TB, TD, TK), lambda b, k, d: (b, d, k)),
            ],
            out_specs=pl.BlockSpec((TB, 1, TK), lambda b, k, d: (b, 0, k)),
            scratch_shapes=[pltpu.VMEM((TB, 1, TK), jnp.float32)] * 3,
        ),
        compiler_params=pltpu.CompilerParams(
            dimension_semantics=("parallel", "parallel", "arbitrary"),
            vmem_limit_bytes=int(vmem_limit_bytes)),
    )(output, output_old)

    loss = loss3[:, 0, :]                       # (B, K) per-class loss
    beta = jnp.asarray(beta, jnp.float32)
    # Beta weighting + exact mean stay in JAX (tiny; supports broadcastable beta).
    return (beta * loss).mean()


def _cls_fo_distill_ref(output, output_old, beta, old_classes, eps=1e-8):
    """Pure-JAX reference mirroring the PyTorch module."""
    x = output[:, :, :old_classes].astype(jnp.float32)
    y = output_old[:, :, :old_classes].astype(jnp.float32)
    dot = jnp.sum(x * y, axis=1)
    nx = jnp.maximum(jnp.sqrt(jnp.sum(x * x, axis=1)), eps)
    ny = jnp.maximum(jnp.sqrt(jnp.sum(y * y, axis=1)), eps)
    loss = 1.0 - dot / (nx * ny)
    return (jnp.asarray(beta, jnp.float32) * loss).mean()


if __name__ == "__main__":
    root = jax.random.PRNGKey(0)

    # (B, D, C_new, C_old, old_classes, dtype, beta, kwargs)
    cases = [
        # Basic small case (single block, TB = B).
        (2, 32, 8, 6, 5, jnp.float32, 0.37, {}),
        # Forced D-tiling with a non-dividing tail (exercises the mask +
        # multi-step "arbitrary" reduction axis + scratch accumulators).
        (3, 100, 9, 7, 5, jnp.float32, 1.25, dict(block_bytes=16 * 1024)),
        # Forced multi-row batch blocks with a batch edge tile (TB=8, B=10).
        (10, 16, 8, 7, 6, jnp.float32, 0.5, dict(block_bytes=64 * 1024)),
        # Native bf16 inputs (no wrapper up-cast; cast happens in the kernel).
        (2, 32, 8, 6, 5, jnp.bfloat16, 0.37, {}),
    ]

    for idx, (B, D, Cn, Co, K, dt, beta, kw) in enumerate(cases):
        k1, k2 = jax.random.split(jax.random.fold_in(root, idx))
        out = jax.random.normal(k1, (B, D, Cn), jnp.float32).astype(dt)
        out_old = jax.random.normal(k2, (B, D, Co), jnp.float32).astype(dt)

        got = jax.block_until_ready(cls_fo_distill(out, out_old, beta, K, **kw))
        want = _cls_fo_distill_ref(out, out_old, beta, K)
        assert jnp.allclose(got, want, rtol=1e-5, atol=1e-6), (idx, got, want)

    print("KERNEL_OK")
</pallas_src>

<mosaic_0001>
module attributes {stable_mosaic.version = 11 : i64} {
  func.func @_cos_distill_kernel(%arg0: i32, %arg1: i32, %arg2: i32, %arg3: memref<2x32x128xf32, #tpu.memory_space<vmem>>, %arg4: memref<2x32x128xf32, #tpu.memory_space<vmem>>, %arg5: memref<2x1x128xf32, #tpu.memory_space<vmem>>, %arg6: memref<2x1x128xf32, #tpu.memory_space<vmem>>, %arg7: memref<2x1x128xf32, #tpu.memory_space<vmem>>, %arg8: memref<2x1x128xf32, #tpu.memory_space<vmem>>) attributes {dimension_semantics = [#tpu.dimension_semantics<parallel>, #tpu.dimension_semantics<parallel>, #tpu.dimension_semantics<arbitrary>], iteration_bounds = array<i64: 1, 1, 1>, scalar_prefetch = 0 : i64, scratch_operands = 3 : i64, tpu.core_type = #tpu.core_type<tc>, window_params = [{transform_indices = @transform_0, window_bounds = array<i64: 2, 32, 128>}, {transform_indices = @transform_1, window_bounds = array<i64: 2, 32, 128>}, {transform_indices = @transform_2, window_bounds = array<i64: 2, 1, 128>}]} {
    %c0_i32 = arith.constant 0 : i32
    %0 = arith.cmpi eq, %arg2, %c0_i32 : i32
    %1 = arith.extui %0 : i1 to i32
    %c0_i32_0 = arith.constant 0 : i32
    %2 = arith.cmpi ne, %1, %c0_i32_0 : i32
    scf.if %2 {
      %cst_28 = arith.constant 0.000000e+00 : f32
      %26 = vector.broadcast %cst_28 : f32 to vector<2x1x128xf32>
      %c0_29 = arith.constant 0 : index
      %c0_30 = arith.constant 0 : index
      %c0_31 = arith.constant 0 : index
      %27 = vector.load %arg6[%c0_29, %c0_30, %c0_31] : memref<2x1x128xf32, #tpu.memory_space<vmem>>, vector<2x1x128xf32>
      tpu.vector_store %arg6[%c0_29, %c0_30, %c0_31], %26 {strides = array<i32>} : memref<2x1x128xf32, #tpu.memory_space<vmem>>, vector<2x1x128xf32>,
      %cst_32 = arith.constant 0.000000e+00 : f32
      %28 = vector.broadcast %cst_32 : f32 to vector<2x1x128xf32>
      %c0_33 = arith.constant 0 : index
      %c0_34 = arith.constant 0 : index
      %c0_35 = arith.constant 0 : index
      %29 = vector.load %arg7[%c0_33, %c0_34, %c0_35] : memref<2x1x128xf32, #tpu.memory_space<vmem>>, vector<2x1x128xf32>
      tpu.vector_store %arg7[%c0_33, %c0_34, %c0_35], %28 {strides = array<i32>} : memref<2x1x128xf32, #tpu.memory_space<vmem>>, vector<2x1x128xf32>,
      %cst_36 = arith.constant 0.000000e+00 : f32
      %30 = vector.broadcast %cst_36 : f32 to vector<2x1x128xf32>
      %c0_37 = arith.constant 0 : index
      %c0_38 = arith.constant 0 : index
      %c0_39 = arith.constant 0 : index
      %31 = vector.load %arg8[%c0_37, %c0_38, %c0_39] : memref<2x1x128xf32, #tpu.memory_space<vmem>>, vector<2x1x128xf32>
      tpu.vector_store %arg8[%c0_37, %c0_38, %c0_39], %30 {strides = array<i32>} : memref<2x1x128xf32, #tpu.memory_space<vmem>>, vector<2x1x128xf32>,
    } else {
    }
    %c0 = arith.constant 0 : index
    %c0_1 = arith.constant 0 : index
    %c0_2 = arith.constant 0 : index
    %3 = vector.load %arg3[%c0, %c0_1, %c0_2] : memref<2x32x128xf32, #tpu.memory_space<vmem>>, vector<2x32x128xf32>
    %c0_3 = arith.constant 0 : index
    %c0_4 = arith.constant 0 : index
    %c0_5 = arith.constant 0 : index
    %4 = vector.load %arg4[%c0_3, %c0_4, %c0_5] : memref<2x32x128xf32, #tpu.memory_space<vmem>>, vector<2x32x128xf32>
    %c0_6 = arith.constant 0 : index
    %c0_7 = arith.constant 0 : index
    %c0_8 = arith.constant 0 : index
    %5 = vector.load %arg6[%c0_6, %c0_7, %c0_8] : memref<2x1x128xf32, #tpu.memory_space<vmem>>, vector<2x1x128xf32>
    %6 = arith.mulf %3, %4 : vector<2x32x128xf32>
    %cst = arith.constant dense<0.000000e+00> : vector<2x128xf32>
    %7 = vector.multi_reduction <add>, %6, %cst [1] : vector<2x32x128xf32> to vector<2x128xf32>
    %8 = vector.shape_cast %7 : vector<2x128xf32> to vector<2x1x128xf32>
    %9 = arith.addf %5, %8 : vector<2x1x128xf32>
    %c0_9 = arith.constant 0 : index
    %c0_10 = arith.constant 0 : index
    %c0_11 = arith.constant 0 : index
    %10 = vector.load %arg6[%c0_9, %c0_10, %c0_11] : memref<2x1x128xf32, #tpu.memory_space<vmem>>, vector<2x1x128xf32>
    tpu.vector_store %arg6[%c0_9, %c0_10, %c0_11], %9 {strides = array<i32>} : memref<2x1x128xf32, #tpu.memory_space<vmem>>, vector<2x1x128xf32>,
    %c0_12 = arith.constant 0 : index
    %c0_13 = arith.constant 0 : index
    %c0_14 = arith.constant 0 : index
    %11 = vector.load %arg7[%c0_12, %c0_13, %c0_14] : memref<2x1x128xf32, #tpu.memory_space<vmem>>, vector<2x1x128xf32>
    %12 = arith.mulf %3, %3 : vector<2x32x128xf32>
    %cst_15 = arith.constant dense<0.000000e+00> : vector<2x128xf32>
    %13 = vector.multi_reduction <add>, %12, %cst_15 [1] : vector<2x32x128xf32> to vector<2x128xf32>
    %14 = vector.shape_cast %13 : vector<2x128xf32> to vector<2x1x128xf32>
    %15 = arith.addf %11, %14 : vector<2x1x128xf32>
    %c0_16 = arith.constant 0 : index
    %c0_17 = arith.constant 0 : index
    %c0_18 = arith.constant 0 : index
    %16 = vector.load %arg7[%c0_16, %c0_17, %c0_18] : memref<2x1x128xf32, #tpu.memory_space<vmem>>, vector<2x1x128xf32>
    tpu.vector_store %arg7[%c0_16, %c0_17, %c0_18], %15 {strides = array<i32>} : memref<2x1x128xf32, #tpu.memory_space<vmem>>, vector<2x1x128xf32>,
    %c0_19 = arith.constant 0 : index
    %c0_20 = arith.constant 0 : index
    %c0_21 = arith.constant 0 : index
    %17 = vector.load %arg8[%c0_19, %c0_20, %c0_21] : memref<2x1x128xf32, #tpu.memory_space<vmem>>, vector<2x1x128xf32>
    %18 = arith.mulf %4, %4 : vector<2x32x128xf32>
    %cst_22 = arith.constant dense<0.000000e+00> : vector<2x128xf32>
    %19 = vector.multi_reduction <add>, %18, %cst_22 [1] : vector<2x32x128xf32> to vector<2x128xf32>
    %20 = vector.shape_cast %19 : vector<2x128xf32> to vector<2x1x128xf32>
    %21 = arith.addf %17, %20 : vector<2x1x128xf32>
    %c0_23 = arith.constant 0 : index
    %c0_24 = arith.constant 0 : index
    %c0_25 = arith.constant 0 : index
    %22 = vector.load %arg8[%c0_23, %c0_24, %c0_25] : memref<2x1x128xf32, #tpu.memory_space<vmem>>, vector<2x1x128xf32>
    tpu.vector_store %arg8[%c0_23, %c0_24, %c0_25], %21 {strides = array<i32>} : memref<2x1x128xf32, #tpu.memory_space<vmem>>, vector<2x1x128xf32>,
    %c0_i32_26 = arith.constant 0 : i32
    %23 = arith.cmpi eq, %arg2, %c0_i32_26 : i32
    %24 = arith.extui %23 : i1 to i32
    %c0_i32_27 = arith.constant 0 : i32
    %25 = arith.cmpi ne, %24, %c0_i32_27 : i32
    scf.if %25 {
      %c0_28 = arith.constant 0 : index
      %c0_29 = arith.constant 0 : index
      %c0_30 = arith.constant 0 : index
      %26 = vector.load %arg7[%c0_28, %c0_29, %c0_30] : memref<2x1x128xf32, #tpu.memory_space<vmem>>, vector<2x1x128xf32>
      %27 = math.sqrt %26 : vector<2x1x128xf32>
      %cst_31 = arith.constant 9.99999993E-9 : f32
      %28 = vector.broadcast %cst_31 : f32 to vector<2x1x128xf32>
      %29 = arith.maximumf %27, %28 : vector<2x1x128xf32>
      %c0_32 = arith.constant 0 : index
      %c0_33 = arith.constant 0 : index
      %c0_34 = arith.constant 0 : index
      %30 = vector.load %arg8[%c0_32, %c0_33, %c0_34] : memref<2x1x128xf32, #tpu.memory_space<vmem>>, vector<2x1x128xf32>
      %31 = math.sqrt %30 : vector<2x1x128xf32>
      %cst_35 = arith.constant 9.99999993E-9 : f32
      %32 = vector.broadcast %cst_35 : f32 to vector<2x1x128xf32>
      %33 = arith.maximumf %31, %32 : vector<2x1x128xf32>
      %c0_36 = arith.constant 0 : index
      %c0_37 = arith.constant 0 : index
      %c0_38 = arith.constant 0 : index
      %34 = vector.load %arg6[%c0_36, %c0_37, %c0_38] : memref<2x1x128xf32, #tpu.memory_space<vmem>>, vector<2x1x128xf32>
      %35 = arith.mulf %29, %33 : vector<2x1x128xf32>
      %36 = arith.divf %34, %35 : vector<2x1x128xf32>
      %cst_39 = arith.constant 1.000000e+00 : f32
      %37 = vector.broadcast %cst_39 : f32 to vector<2x1x128xf32>
      %38 = arith.subf %37, %36 : vector<2x1x128xf32>
      %c0_40 = arith.constant 0 : index
      %c0_41 = arith.constant 0 : index
      %c0_42 = arith.constant 0 : index
      %39 = vector.load %arg5[%c0_40, %c0_41, %c0_42] : memref<2x1x128xf32, #tpu.memory_space<vmem>>, vector<2x1x128xf32>
      tpu.vector_store %arg5[%c0_40, %c0_41, %c0_42], %38 {strides = array<i32>} : memref<2x1x128xf32, #tpu.memory_space<vmem>>, vector<2x1x128xf32>,
    } else {
    }
    return
  }
  func.func @transform_0(%arg0: i32, %arg1: i32, %arg2: i32) -> (i32, i32, i32) {
    %c0_i32 = arith.constant 0 : i32
    return %arg0, %arg2, %arg1 : i32, i32, i32
  }
  func.func @transform_1(%arg0: i32, %arg1: i32, %arg2: i32) -> (i32, i32, i32) {
    %c0_i32 = arith.constant 0 : i32
    return %arg0, %arg2, %arg1 : i32, i32, i32
  }
  func.func @transform_2(%arg0: i32, %arg1: i32, %arg2: i32) -> (i32, i32, i32) {
    %c0_i32 = arith.constant 0 : i32
    %c0_i32_0 = arith.constant 0 : i32
    return %arg0, %c0_i32, %arg1 : i32, i32, i32
  }
}

</mosaic_0001>

<llo_original>
// kernel: tpu_custom_call.1
$region0: #{tpu_custom_call.1}
  #allocation0 [shape = 'u32[]', space=smem, size = 0x4, offset = 0x4, fixed_abs, tag = 'smem constant byte address 0x4 - core index']
  #allocation1 [shape = 'u32[144,128]{1,0:T(1,128)}', space=vmem, size = 0x12000, scoped, tag = 'internal scratch']
  #allocation2 [shape = 'f32[2,1,128]{2,1,0:T(1,128)}', space=vmem, size = 0x400, scoped, tag = 'scratch operand']
  #allocation3 [shape = 'f32[2,1,128]{2,1,0:T(1,128)}', space=vmem, size = 0x400, scoped, tag = 'scratch operand']
  #allocation4 [shape = 'f32[2,1,128]{2,1,0:T(1,128)}', space=vmem, size = 0x400, scoped, tag = 'scratch operand']
  %s0 = inlined_call_operand.vmem [shape: f32[2,32,8], index: 0, kind: input, shape index: {}]
  %s1 = inlined_call_operand.vmem [shape: f32[2,32,6], index: 1, kind: input, shape index: {}]
  %s2 = inlined_call_operand.hbm [shape: f32[2,1,5], index: 2, kind: output, shape index: {}]
  %s3 = sld [smem:[#allocation0]]
  $region26: #{tpu_custom_call.1} parent=0
    _
  %s5 = ssub.s32 1, %s3
  %s6 = scalar_select 0, %s5, %s3
  $region1: #{tpu_custom_call.1} parent=0
    #allocation5 [shape = 'u8[1024]{0}', space=vmem, size = 0x400, scoped, tag = 'output window, operand 0, single buffered']
    #allocation6 [shape = 's32[1]{0}', space=sflag, size = 0x4, scoped, tag = 'scoped memory for tpu_custom_call.1']
    %7 = vsyncpa [#allocation6], 0
    // Predicated region
    $region2: #{tpu_custom_call.1} parent=1 // pred_check
      _
    $region3: #{tpu_custom_call.1} parent=1 // pred_check_branch
      %9 = sbr.rel (0) target = $region5
    $region4: #{tpu_custom_call.1} parent=1 // pred_region
      _
    $region5: #{tpu_custom_call.1} parent=1 // pred_fallthru
      _
    // Predicated region
    $region6: #{tpu_custom_call.1} parent=1 // pred_check
      _
    $region7: #{tpu_custom_call.1} parent=1 // pred_check_branch
      %11 = sbr.rel (0) target = $region9
    $region8: #{tpu_custom_call.1} parent=1 // pred_region
      _
    $region9: #{tpu_custom_call.1} parent=1 // pred_fallthru
      _
    %p12 = scmp.eq.s32.totalorder 0, 0
    // Predicated region
    $region10: #{tpu_custom_call.1} parent=1 // pred_check
      %p13 = pneg %p12
    $region11: #{tpu_custom_call.1} parent=1 // pred_check_branch
      %15 = sbr.rel (%p13) target = $region13
    $region12: #{tpu_custom_call.1} parent=1 // pred_region
      %16 = vst [vmem:[#allocation2] sm:$0x1] 0.0
      %17 = vst [vmem:[#allocation2 + $0x1] sm:$0x1] 0.0
      %18 = vst [vmem:[#allocation3] sm:$0x1] 0.0
      %19 = vst [vmem:[#allocation3 + $0x1] sm:$0x1] 0.0
      %20 = vst [vmem:[#allocation4] sm:$0x1] 0.0
      %21 = vst [vmem:[#allocation4 + $0x1] sm:$0x1] 0.0
    $region13: #{tpu_custom_call.1} parent=1 // pred_fallthru
      _
    %v22 = vld [vmem:[%s0] sm:$0xff]
    %v23 = vld [vmem:[%s0 + $0x8] sm:$0xff]
    %v24 = vld [vmem:[%s0 + $0x10] sm:$0xff]
    %v25 = vld [vmem:[%s0 + $0x18] sm:$0xff]
    %v26 = vld [vmem:[%s0 + $0x20] sm:$0xff]
    %v27 = vld [vmem:[%s0 + $0x28] sm:$0xff]
    %v28 = vld [vmem:[%s0 + $0x30] sm:$0xff]
    %v29 = vld [vmem:[%s0 + $0x38] sm:$0xff]
    %v30 = vld [vmem:[%s1] sm:$0xff]
    %v31 = vld [vmem:[%s1 + $0x8] sm:$0xff]
    %v32 = vld [vmem:[%s1 + $0x10] sm:$0xff]
    %v33 = vld [vmem:[%s1 + $0x18] sm:$0xff]
    %v34 = vld [vmem:[%s1 + $0x20] sm:$0xff]
    %v35 = vld [vmem:[%s1 + $0x28] sm:$0xff]
    %v36 = vld [vmem:[%s1 + $0x30] sm:$0xff]
    %v37 = vld [vmem:[%s1 + $0x38] sm:$0xff]
    %v38 = vld [vmem:[#allocation2] sm:$0x1]
    %v39 = vld [vmem:[#allocation2 + $0x1] sm:$0x1]
    %v40 = vmul.f32 %v22, %v30
    %v41 = vmul.f32 %v23, %v31
    %v42 = vmul.f32 %v24, %v32
    %v43 = vmul.f32 %v25, %v33
    %v44 = vmul.f32 %v26, %v34
    %v45 = vmul.f32 %v27, %v35
    %v46 = vmul.f32 %v28, %v36
    %v47 = vmul.f32 %v29, %v37
    %v48 = vadd.f32 %v40, %v41
    %v49 = vadd.f32 %v48, %v42
    %v50 = vadd.f32 %v49, %v43
    %v51 = vrot.slane %v50, 4
    %v52 = vadd.f32 %v50, %v51
    %v53 = vrot.slane %v52, 2
    %v54 = vadd.f32 %v52, %v53
    %v55 = vrot.slane %v54, 1
    %v56 = vadd.f32 %v54, %v55
    %v57 = vadd.f32 %v44, %v45
    %v58 = vadd.f32 %v57, %v46
    %v59 = vadd.f32 %v58, %v47
    %v60 = vrot.slane %v59, 4
    %v61 = vadd.f32 %v59, %v60
    %v62 = vrot.slane %v61, 2
    %v63 = vadd.f32 %v61, %v62
    %v64 = vrot.slane %v63, 1
    %v65 = vadd.f32 %v63, %v64
    %v66 = vadd.f32 %v38, %v56
    %v67 = vadd.f32 %v39, %v65
    %68 = vst [vmem:[#allocation2] sm:$0x1] %v66
    %69 = vst [vmem:[#allocation2 + $0x1] sm:$0x1] %v67
    %v70 = vld [vmem:[#allocation3] sm:$0x1]
    %v71 = vld [vmem:[#allocation3 + $0x1] sm:$0x1]
    %v72 = vmul.f32 %v22, %v22
    %v73 = vmul.f32 %v23, %v23
    %v74 = vmul.f32 %v24, %v24
    %v75 = vmul.f32 %v25, %v25
    %v76 = vmul.f32 %v26, %v26
    %v77 = vmul.f32 %v27, %v27
    %v78 = vmul.f32 %v28, %v28
    %v79 = vmul.f32 %v29, %v29
    %v80 = vadd.f32 %v72, %v73
    %v81 = vadd.f32 %v80, %v74
    %v82 = vadd.f32 %v81, %v75
    %v83 = vrot.slane %v82, 4
    %v84 = vadd.f32 %v82, %v83
    %v85 = vrot.slane %v84, 2
    %v86 = vadd.f32 %v84, %v85
    %v87 = vrot.slane %v86, 1
    %v88 = vadd.f32 %v86, %v87
    %v89 = vadd.f32 %v76, %v77
    %v90 = vadd.f32 %v89, %v78
    %v91 = vadd.f32 %v90, %v79
    %v92 = vrot.slane %v91, 4
    %v93 = vadd.f32 %v91, %v92
    %v94 = vrot.slane %v93, 2
    %v95 = vadd.f32 %v93, %v94
    %v96 = vrot.slane %v95, 1
    %v97 = vadd.f32 %v95, %v96
    %v98 = vadd.f32 %v70, %v88
    %v99 = vadd.f32 %v71, %v97
    %100 = vst [vmem:[#allocation3] sm:$0x1] %v98
    %101 = vst [vmem:[#allocation3 + $0x1] sm:$0x1] %v99
    %v102 = vld [vmem:[#allocation4] sm:$0x1]
    %v103 = vld [vmem:[#allocation4 + $0x1] sm:$0x1]
    %v104 = vmul.f32 %v30, %v30
    %v105 = vmul.f32 %v31, %v31
    %v106 = vmul.f32 %v32, %v32
    %v107 = vmul.f32 %v33, %v33
    %v108 = vmul.f32 %v34, %v34
    %v109 = vmul.f32 %v35, %v35
    %v110 = vmul.f32 %v36, %v36
    %v111 = vmul.f32 %v37, %v37
    %v112 = vadd.f32 %v104, %v105
    %v113 = vadd.f32 %v112, %v106
    %v114 = vadd.f32 %v113, %v107
    %v115 = vrot.slane %v114, 4
    %v116 = vadd.f32 %v114, %v115
    %v117 = vrot.slane %v116, 2
    %v118 = vadd.f32 %v116, %v117
    %v119 = vrot.slane %v118, 1
    %v120 = vadd.f32 %v118, %v119
    %v121 = vadd.f32 %v108, %v109
    %v122 = vadd.f32 %v121, %v110
    %v123 = vadd.f32 %v122, %v111
    %v124 = vrot.slane %v123, 4
    %v125 = vadd.f32 %v123, %v124
    %v126 = vrot.slane %v125, 2
    %v127 = vadd.f32 %v125, %v126
    %v128 = vrot.slane %v127, 1
    %v129 = vadd.f32 %v127, %v128
    %v130 = vadd.f32 %v102, %v120
    %v131 = vadd.f32 %v103, %v129
    %132 = vst [vmem:[#allocation4] sm:$0x1] %v130
    %133 = vst [vmem:[#allocation4 + $0x1] sm:$0x1] %v131
    // Predicated region
    $region14: #{tpu_custom_call.1} parent=1 // pred_check
      %p134 = pneg %p12
    $region15: #{tpu_custom_call.1} parent=1 // pred_check_branch
      %136 = sbr.rel (%p134) target = $region17
    $region16: #{tpu_custom_call.1} parent=1 // pred_region
      %v137 = vld [vmem:[#allocation3] sm:$0x1]
      %v138 = vld [vmem:[#allocation3 + $0x1] sm:$0x1]
      %v139 = vrsqrt.pop %v137
      %v140 = vmul.f32 %v137, %v139
      %vm141 = vcmp.eq.f32.partialorder %v137, inf
      %v142 = vsel %vm141, %v137, %v140
      %vm143 = vcmp.eq.f32.partialorder %v137, 0.0
      %v144 = vand.u32 %v137, 2147483648
      %v145 = vsel %vm143, %v144, %v142
      %v146 = vrsqrt.pop %v138
      %v147 = vmul.f32 %v138, %v146
      %vm148 = vcmp.eq.f32.partialorder %v138, inf
      %v149 = vsel %vm148, %v138, %v147
      %vm150 = vcmp.eq.f32.partialorder %v138, 0.0
      %v151 = vand.u32 %v138, 2147483648
      %v152 = vsel %vm150, %v151, %v149
      %v153 = vmax.f32 %v145, 1e-08
      %v154 = vmax.f32 %v152, 1e-08
      %v155 = vld [vmem:[#allocation4] sm:$0x1]
      %v156 = vld [vmem:[#allocation4 + $0x1] sm:$0x1]
      %v157 = vrsqrt.pop %v155
      %v158 = vmul.f32 %v155, %v157
      %vm159 = vcmp.eq.f32.partialorder %v155, inf
      %v160 = vsel %vm159, %v155, %v158
      %vm161 = vcmp.eq.f32.partialorder %v155, 0.0
      %v162 = vand.u32 %v155, 2147483648
      %v163 = vsel %vm161, %v162, %v160
      %v164 = vrsqrt.pop %v156
      %v165 = vmul.f32 %v156, %v164
      %vm166 = vcmp.eq.f32.partialorder %v156, inf
      %v167 = vsel %vm166, %v156, %v165
      %vm168 = vcmp.eq.f32.partialorder %v156, 0.0
      %v169 = vand.u32 %v156, 2147483648
      %v170 = vsel %vm168, %v169, %v167
      %v171 = vmax.f32 %v163, 1e-08
      %v172 = vmax.f32 %v170, 1e-08
      %v173 = vld [vmem:[#allocation2] sm:$0x1]
      %v174 = vld [vmem:[#allocation2 + $0x1] sm:$0x1]
      %v175 = vmul.f32 %v153, %v171
      %v176 = vmul.f32 %v154, %v172
      %v177 = vrcp.pop %v175
      %v178 = vmul.f32 %v173, %v177
      %v179 = vrcp.pop %v176
      %v180 = vmul.f32 %v174, %v179
      %v181 = vsub.f32 1.0, %v178
      %v182 = vsub.f32 1.0, %v180
      %183 = vst [vmem:[#allocation5] sm:$0x1] %v181
      %184 = vst [vmem:[#allocation5 + $0x1] sm:$0x1] %v182
    $region17: #{tpu_custom_call.1} parent=1 // pred_fallthru
      _
    // Predicated region
    $region18: #{tpu_custom_call.1} parent=1 // pred_check
      _
    $region19: #{tpu_custom_call.1} parent=1 // pred_check_branch
      %186 = sbr.rel (0) target = $region21
    $region20: #{tpu_custom_call.1} parent=1 // pred_region
      %s188 = ssub.s32 32, 32
      %189 = vsyncadd [#allocation6], %s188
      %s190 = sshll.u32 [#allocation5], 4
      %s191 = int_to_ptr.vmem [resolvable:$true] %s190
      %196 = dma.vmem_to_hbm [thread:$0]  %s191, 32, %s2, [#allocation6], 16, 16, 1
    $region21: #{tpu_custom_call.1} parent=1 // pred_fallthru
      _
    // Predicated region
    $region22: #{tpu_custom_call.1} parent=1 // pred_check
      _
    $region23: #{tpu_custom_call.1} parent=1 // pred_check_branch
      %198 = sbr.rel (0) target = $region25
    $region24: #{tpu_custom_call.1} parent=1 // pred_region
      %199 = dma.done [#allocation6], 32
    $region25: #{tpu_custom_call.1} parent=1 // pred_fallthru
      _
    %200 = vsyncpa [#allocation6], 1

</llo_original>
